<compile_context>
chip_gen: v5e
topology: v5e:2x2
jax: 0.10.0
libtpu: 0.0.40
codegen_flags: <defaults>
</compile_context>

<pallas_src>
import jax
import jax.numpy as jnp
from jax.experimental import pallas as pl
from jax.experimental.pallas import tpu as pltpu


def _round_up(v, m):
    return (v + m - 1) // m * m


# ----------------------------- Pallas kernel ------------------------------- #
def _roi_box_head_kernel(
    x_ref,                      # (TN, D_pad)        bf16 pooled ROI features tile
    w1_ref, b1_ref,             # (D_pad, Hid) bf16, (1, Hid) f32     fc6
    w2_ref, b2_ref,             # (Hid, Hid)  bf16, (1, Hid) f32      fc7
    wh_ref, bh_ref,             # (Hid, NH_pad) bf16, (1, NH_pad) f32 fused cls|box|corner head
    feat_ref, head_ref,         # outputs: (TN, Hid) f32, (TN, NH_pad) f32
):
    # feature_extractor: fc6 -> ReLU -> fc7 -> ReLU   (bf16 matmuls, f32 accum)
    h1 = jnp.dot(x_ref[...], w1_ref[...],
                 preferred_element_type=jnp.float32) + b1_ref[...]
    h1 = jnp.maximum(h1, 0.0)
    h2 = jnp.dot(h1.astype(jnp.bfloat16), w2_ref[...],
                 preferred_element_type=jnp.float32) + b2_ref[...]
    h2 = jnp.maximum(h2, 0.0)
    feat_ref[...] = h2.astype(feat_ref.dtype)

    # predictor: one fused, lane-dense (128-multiple) head matmul.
    head_ref[...] = (jnp.dot(h2.astype(jnp.bfloat16), wh_ref[...],
                             preferred_element_type=jnp.float32)
                     + bh_ref[...]).astype(head_ref.dtype)


# ---------------------------- parameter packing ----------------------------- #
def pack_params(params, *, lane=128):
    """Pack PyTorch-shaped params for the fused kernel.

    - fc6 weight K dim zero-padded to a multiple of 128,
    - cls|box|corner weights concatenated along N and zero-padded to 128,
    - weights cast to bf16, biases kept f32.
    """
    w1, b1 = params["w1"], params["b1"]
    w2, b2 = params["w2"], params["b2"]
    wc, bc = params["wc"], params["bc"]
    wb, bb = params["wb"], params["bb"]
    wk, bk = params["wk"], params["bk"]

    d_in, hid = w1.shape
    ncls, nbox, ncor = wc.shape[1], wb.shape[1], wk.shape[1]

    d_pad = _round_up(d_in, lane)
    w1p = jnp.zeros((d_pad, hid), jnp.float32).at[:d_in].set(w1)

    nhead = ncls + nbox + ncor
    nhead_pad = _round_up(nhead, lane)
    wh = jnp.concatenate([wc, wb, wk], axis=1)
    bh = jnp.concatenate([bc, bb, bk], axis=1)
    whp = jnp.zeros((hid, nhead_pad), jnp.float32).at[:, :nhead].set(wh)
    bhp = jnp.zeros((1, nhead_pad), jnp.float32).at[:, :nhead].set(bh)

    return {
        "w1": w1p.astype(jnp.bfloat16), "b1": b1.astype(jnp.float32),
        "w2": w2.astype(jnp.bfloat16),  "b2": b2.astype(jnp.float32),
        "wh": whp.astype(jnp.bfloat16), "bh": bhp,
        "dims": (int(d_in), int(d_pad), int(hid),
                 int(ncls), int(nbox), int(ncor), int(nhead_pad)),
    }


# ------------------------------ Pallas wrapper ------------------------------ #
def roi_box_head_pallas(x, packed, *, row_tile=128):
    """Fused feature_extractor MLP + predictor heads.

    x:      (N, D_in) pooled ROI features (any N; padded internally).
    packed: output of pack_params.
    Returns (feat (N,Hid), class_logits (N,NCLS), box_regression (N,NBOX),
             corners_semantic (N,NCOR)).
    """
    d_in, d_pad, hid, ncls, nbox, ncor, nhead_pad = packed["dims"]
    n = x.shape[0]
    n_pad = _round_up(max(n, row_tile), row_tile)

    # Pad rows to the tile and lanes to 128; cast to bf16 at the call boundary.
    xp = jnp.zeros((n_pad, d_pad), jnp.bfloat16)
    xp = xp.at[:n, :d_in].set(x.astype(jnp.bfloat16))

    grid = (n_pad // row_tile,)

    def row_spec(width):
        return pl.BlockSpec((row_tile, width), lambda i: (i, 0))

    def full_spec(arr):
        # Weights/biases: resident block, constant index_map.
        return pl.BlockSpec(arr.shape, lambda i: (0, 0))

    in_specs = [
        row_spec(d_pad),                                    # x row tile
        full_spec(packed["w1"]), full_spec(packed["b1"]),
        full_spec(packed["w2"]), full_spec(packed["b2"]),
        full_spec(packed["wh"]), full_spec(packed["bh"]),
    ]
    out_specs = (row_spec(hid), row_spec(nhead_pad))
    out_shape = (
        jax.ShapeDtypeStruct((n_pad, hid), jnp.float32),
        jax.ShapeDtypeStruct((n_pad, nhead_pad), jnp.float32),
    )

    # Advisory cost estimate so XLA schedules surrounding glue around the call.
    flops = 2 * n_pad * (d_pad * hid + hid * hid + hid * nhead_pad)
    bytes_accessed = (
        xp.size * xp.dtype.itemsize
        + sum(packed[k].size * packed[k].dtype.itemsize
              for k in ("w1", "b1", "w2", "b2", "wh", "bh"))
        + n_pad * hid * 4 + n_pad * nhead_pad * 4
    )
    cost = pl.CostEstimate(flops=int(flops), transcendentals=0,
                           bytes_accessed=int(bytes_accessed))

    feat, head = pl.pallas_call(
        _roi_box_head_kernel,
        grid_spec=pltpu.PrefetchScalarGridSpec(
            num_scalar_prefetch=0,
            grid=grid,
            in_specs=in_specs,
            out_specs=out_specs,
        ),
        out_shape=out_shape,
        compiler_params=pltpu.CompilerParams(
            dimension_semantics=("parallel",)),
        cost_estimate=cost,
    )(
        xp,
        packed["w1"], packed["b1"],
        packed["w2"], packed["b2"],
        packed["wh"], packed["bh"],
    )

    # Slice the lane-dense head slab back into the three PyTorch outputs.
    feat = feat[:n]
    class_logits = head[:n, :ncls]
    box_regression = head[:n, ncls:ncls + nbox]
    corners_semantic = head[:n, ncls + nbox:ncls + nbox + ncor]
    return feat, class_logits, box_regression, corners_semantic


# ------------------------------- glue (JAX) -------------------------------- #
def roi_pool_glue(features, boxes, pooled=4):
    """Crude ROI pooling stand-in: fixed PxP crop at each box top-left corner.

    features: (B, C, H, W)  NCHW
    boxes:    (N, 3) int32  rows of (batch_idx, y, x)
    returns:  (N, C*pooled*pooled) flattened ROI features.
    # TODO(synk): proper ROIAlign-3D bilinear sampling (data-dependent gather);
    #             natural home is an in-kernel double-buffered DMA gather.
    """
    b, c, h, w = features.shape

    def crop(box):
        bi, y, x = box[0], box[1], box[2]
        img = jax.lax.dynamic_index_in_dim(features, bi, axis=0, keepdims=False)
        patch = jax.lax.dynamic_slice(img, (0, y, x), (c, pooled, pooled))
        return patch.reshape(-1)

    return jax.vmap(crop)(boxes)


def rm_gt_from_proposals_glue(class_logits, box_regression, corners_semantic, is_gt):
    """JAX equivalent of rm_gt_from_proposals_ (boolean-mask gather, glue).

    Note: nonzero(fill_value=0) duplicates row 0 into the padded tail; callers
    must respect n_keep.
    """
    notgt = is_gt == 0
    idx = jnp.nonzero(notgt, size=is_gt.shape[0], fill_value=0)[0]
    n_keep = jnp.sum(notgt)
    cl = class_logits[idx]
    br = box_regression[idx]
    cs = None if corners_semantic is None else corners_semantic[idx]
    return cl, br, cs, n_keep


def _make_params(key, d_in, hid, num_classes, box_dim=7, corner_dim=24):
    keys = jax.random.split(key, 10)
    nbox = num_classes * box_dim

    def lin(k, fan_in, fan_out):
        scale = 1.0 / jnp.sqrt(jnp.float32(fan_in))
        return jax.random.uniform(k, (fan_in, fan_out), jnp.float32, -scale, scale)

    return {
        "w1": lin(keys[0], d_in, hid), "b1": jnp.zeros((1, hid), jnp.float32),
        "w2": lin(keys[1], hid, hid),  "b2": jnp.zeros((1, hid), jnp.float32),
        "wc": lin(keys[2], hid, num_classes), "bc": jnp.zeros((1, num_classes), jnp.float32),
        "wb": lin(keys[3], hid, nbox), "bb": jnp.zeros((1, nbox), jnp.float32),
        "wk": lin(keys[4], hid, corner_dim), "bk": jnp.zeros((1, corner_dim), jnp.float32),
    }


# ------------------------------- references -------------------------------- #
def _reference_bf16(x, packed):
    """Same bf16-weight / f32-accumulate compute graph as the kernel."""
    d_in, d_pad, hid, ncls, nbox, ncor, nhead_pad = packed["dims"]
    xb = jnp.zeros((x.shape[0], d_pad), jnp.bfloat16).at[:, :d_in].set(
        x.astype(jnp.bfloat16))
    h1 = jnp.maximum(jnp.dot(xb, packed["w1"],
                             preferred_element_type=jnp.float32) + packed["b1"], 0.0)
    h2 = jnp.maximum(jnp.dot(h1.astype(jnp.bfloat16), packed["w2"],
                             preferred_element_type=jnp.float32) + packed["b2"], 0.0)
    head = jnp.dot(h2.astype(jnp.bfloat16), packed["wh"],
                   preferred_element_type=jnp.float32) + packed["bh"]
    return (h2, head[:, :ncls], head[:, ncls:ncls + nbox],
            head[:, ncls + nbox:ncls + nbox + ncor])


def _reference_f32(x, p):
    """Original module semantics, full f32."""
    h1 = jnp.maximum(x @ p["w1"] + p["b1"], 0.0)
    h2 = jnp.maximum(h1 @ p["w2"] + p["b2"], 0.0)
    return (h2,
            h2 @ p["wc"] + p["bc"],
            h2 @ p["wb"] + p["bb"],
            h2 @ p["wk"] + p["bk"])


# ---------------------------------- main ------------------------------------ #
if __name__ == "__main__":
    key = jax.random.PRNGKey(0)
    k_feat, k_box, k_param, k_gt = jax.random.split(key, 4)

    # Small deterministic inputs.
    B, C, H, W = 2, 4, 16, 16          # NCHW feature maps
    N = 16                             # total proposals over the batch
    POOLED = 4
    D_IN = C * POOLED * POOLED         # 64 (padded to 128 inside the wrapper)
    HID = 128
    NUM_CLASSES = 8                    # heads: 8 + 56 + 24 = 88 -> padded to 128

    features = jax.random.normal(k_feat, (B, C, H, W), jnp.float32)

    batch_idx = jnp.repeat(jnp.arange(B, dtype=jnp.int32), N // B)
    ys = jax.random.randint(k_box, (N,), 0, H - POOLED, dtype=jnp.int32)
    xs = jax.random.randint(jax.random.fold_in(k_box, 1), (N,), 0, W - POOLED,
                            dtype=jnp.int32)
    boxes = jnp.stack([batch_idx, ys, xs], axis=-1)
    is_gt = (jax.random.uniform(k_gt, (N,)) > 0.8).astype(jnp.int32)

    params = _make_params(k_param, D_IN, HID, NUM_CLASSES)
    packed = pack_params(params)

    # Glue: ROI pooling into (N, D_IN).
    x_roi = roi_pool_glue(features, boxes, pooled=POOLED)

    # Hot path: fused feature-extractor MLP + fused predictor heads in Pallas.
    feat, class_logits, box_regression, corners_semantic = jax.block_until_ready(
        roi_box_head_pallas(x_roi, packed, row_tile=128))

    # Glue: rm_gt_from_proposals_ (boolean-mask gather, as in eval_in_train path).
    cl_, br_, cs_, n_keep = rm_gt_from_proposals_glue(
        class_logits, box_regression, corners_semantic, is_gt)
    jax.block_until_ready((cl_, br_, cs_, n_keep))
    # TODO(synk): post_processor_ (NMS / box decode) and loss_evaluator/subsample
    # have no clean Pallas equivalent (dynamic-shape, host-side bookkeeping).

    got = (feat, class_logits, box_regression, corners_semantic)

    # Check 1: bit-for-bit-ish vs a JAX reference using the same bf16 path.
    ref_b = _reference_bf16(x_roi, packed)
    ok_b = all(bool(jnp.allclose(a, b, atol=1e-2, rtol=1e-2))
               for a, b in zip(got, ref_b))
    assert ok_b, "Pallas output mismatch vs bf16-path reference"

    # Check 2: semantics vs the original f32 module (looser, bf16 weights).
    ref_f = _reference_f32(x_roi, params)
    ok_f = all(bool(jnp.allclose(a, b, atol=5e-2, rtol=5e-2))
               for a, b in zip(got, ref_f))
    assert ok_f, "Pallas output drifted from f32 module semantics"

    print("KERNEL_OK")
</pallas_src>

<mosaic_0001>
module attributes {stable_mosaic.version = 11 : i64} {
  func.func @_roi_box_head_kernel(%arg0: i32, %arg1: memref<128x128xbf16, #tpu.memory_space<vmem>>, %arg2: memref<128x128xbf16, #tpu.memory_space<vmem>>, %arg3: memref<1x128xf32, #tpu.memory_space<vmem>>, %arg4: memref<128x128xbf16, #tpu.memory_space<vmem>>, %arg5: memref<1x128xf32, #tpu.memory_space<vmem>>, %arg6: memref<128x128xbf16, #tpu.memory_space<vmem>>, %arg7: memref<1x128xf32, #tpu.memory_space<vmem>>, %arg8: memref<128x128xf32, #tpu.memory_space<vmem>>, %arg9: memref<128x128xf32, #tpu.memory_space<vmem>>) attributes {dimension_semantics = [#tpu.dimension_semantics<parallel>], iteration_bounds = array<i64: 1>, scalar_prefetch = 0 : i64, scratch_operands = 0 : i64, tpu.core_type = #tpu.core_type<tc>, window_params = [{transform_indices = @transform_0, window_bounds = array<i64: 128, 128>}, {pipeline_mode = #tpu.pipeline_mode<synchronous>, transform_indices = @transform_1, window_bounds = array<i64: 128, 128>}, {pipeline_mode = #tpu.pipeline_mode<synchronous>, transform_indices = @transform_2, window_bounds = array<i64: 1, 128>}, {pipeline_mode = #tpu.pipeline_mode<synchronous>, transform_indices = @transform_3, window_bounds = array<i64: 128, 128>}, {pipeline_mode = #tpu.pipeline_mode<synchronous>, transform_indices = @transform_4, window_bounds = array<i64: 1, 128>}, {pipeline_mode = #tpu.pipeline_mode<synchronous>, transform_indices = @transform_5, window_bounds = array<i64: 128, 128>}, {pipeline_mode = #tpu.pipeline_mode<synchronous>, transform_indices = @transform_6, window_bounds = array<i64: 1, 128>}, {transform_indices = @transform_7, window_bounds = array<i64: 128, 128>}, {transform_indices = @transform_8, window_bounds = array<i64: 128, 128>}]} {
    %c0 = arith.constant 0 : index
    %c0_0 = arith.constant 0 : index
    %0 = vector.load %arg1[%c0, %c0_0] : memref<128x128xbf16, #tpu.memory_space<vmem>>, vector<128x128xbf16>
    %c0_1 = arith.constant 0 : index
    %c0_2 = arith.constant 0 : index
    %1 = vector.load %arg2[%c0_1, %c0_2] : memref<128x128xbf16, #tpu.memory_space<vmem>>, vector<128x128xbf16>
    %cst = arith.constant dense<0.000000e+00> : vector<128x128xf32>
    %2 = tpu.matmul %0, %1, %cst {dimension_numbers = #tpu.dot_dimension_numbers<[1], [0], [0], [1], [0, 0, 1, 1], [], []>} : vector<128x128xbf16>, vector<128x128xbf16>, vector<128x128xf32> -> vector<128x128xf32>
    %c0_3 = arith.constant 0 : index
    %c0_4 = arith.constant 0 : index
    %3 = vector.load %arg3[%c0_3, %c0_4] : memref<1x128xf32, #tpu.memory_space<vmem>>, vector<1x128xf32>
    %4 = vector.broadcast %3 : vector<1x128xf32> to vector<128x128xf32>
    %5 = arith.addf %2, %4 : vector<128x128xf32>
    %cst_5 = arith.constant 0.000000e+00 : f32
    %6 = vector.broadcast %cst_5 : f32 to vector<128x128xf32>
    %7 = arith.maximumf %5, %6 : vector<128x128xf32>
    %8 = arith.truncf %7 : vector<128x128xf32> to vector<128x128xbf16>
    %c0_6 = arith.constant 0 : index
    %c0_7 = arith.constant 0 : index
    %9 = vector.load %arg4[%c0_6, %c0_7] : memref<128x128xbf16, #tpu.memory_space<vmem>>, vector<128x128xbf16>
    %cst_8 = arith.constant dense<0.000000e+00> : vector<128x128xf32>
    %10 = tpu.matmul %8, %9, %cst_8 {dimension_numbers = #tpu.dot_dimension_numbers<[1], [0], [0], [1], [0, 0, 1, 1], [], []>} : vector<128x128xbf16>, vector<128x128xbf16>, vector<128x128xf32> -> vector<128x128xf32>
    %c0_9 = arith.constant 0 : index
    %c0_10 = arith.constant 0 : index
    %11 = vector.load %arg5[%c0_9, %c0_10] : memref<1x128xf32, #tpu.memory_space<vmem>>, vector<1x128xf32>
    %12 = vector.broadcast %11 : vector<1x128xf32> to vector<128x128xf32>
    %13 = arith.addf %10, %12 : vector<128x128xf32>
    %cst_11 = arith.constant 0.000000e+00 : f32
    %14 = vector.broadcast %cst_11 : f32 to vector<128x128xf32>
    %15 = arith.maximumf %13, %14 : vector<128x128xf32>
    %c0_12 = arith.constant 0 : index
    %c0_13 = arith.constant 0 : index
    %16 = vector.load %arg8[%c0_12, %c0_13] : memref<128x128xf32, #tpu.memory_space<vmem>>, vector<128x128xf32>
    tpu.vector_store %arg8[%c0_12, %c0_13], %15 {strides = array<i32>} : memref<128x128xf32, #tpu.memory_space<vmem>>, vector<128x128xf32>,
    %17 = arith.truncf %15 : vector<128x128xf32> to vector<128x128xbf16>
    %c0_14 = arith.constant 0 : index
    %c0_15 = arith.constant 0 : index
    %18 = vector.load %arg6[%c0_14, %c0_15] : memref<128x128xbf16, #tpu.memory_space<vmem>>, vector<128x128xbf16>
    %cst_16 = arith.constant dense<0.000000e+00> : vector<128x128xf32>
    %19 = tpu.matmul %17, %18, %cst_16 {dimension_numbers = #tpu.dot_dimension_numbers<[1], [0], [0], [1], [0, 0, 1, 1], [], []>} : vector<128x128xbf16>, vector<128x128xbf16>, vector<128x128xf32> -> vector<128x128xf32>
    %c0_17 = arith.constant 0 : index
    %c0_18 = arith.constant 0 : index
    %20 = vector.load %arg7[%c0_17, %c0_18] : memref<1x128xf32, #tpu.memory_space<vmem>>, vector<1x128xf32>
    %21 = vector.broadcast %20 : vector<1x128xf32> to vector<128x128xf32>
    %22 = arith.addf %19, %21 : vector<128x128xf32>
    %c0_19 = arith.constant 0 : index
    %c0_20 = arith.constant 0 : index
    %23 = vector.load %arg9[%c0_19, %c0_20] : memref<128x128xf32, #tpu.memory_space<vmem>>, vector<128x128xf32>
    tpu.vector_store %arg9[%c0_19, %c0_20], %22 {strides = array<i32>} : memref<128x128xf32, #tpu.memory_space<vmem>>, vector<128x128xf32>,
    return
  }
  func.func @transform_0(%arg0: i32) -> (i32, i32) {
    %c0_i32 = arith.constant 0 : i32
    %c0_i32_0 = arith.constant 0 : i32
    return %arg0, %c0_i32 : i32, i32
  }
  func.func @transform_1(%arg0: i32) -> (i32, i32) {
    %c0_i32 = arith.constant 0 : i32
    %c0_i32_0 = arith.constant 0 : i32
    %c0_i32_1 = arith.constant 0 : i32
    return %c0_i32, %c0_i32_0 : i32, i32
  }
  func.func @transform_2(%arg0: i32) -> (i32, i32) {
    %c0_i32 = arith.constant 0 : i32
    %c0_i32_0 = arith.constant 0 : i32
    %c0_i32_1 = arith.constant 0 : i32
    return %c0_i32, %c0_i32_0 : i32, i32
  }
  func.func @transform_3(%arg0: i32) -> (i32, i32) {
    %c0_i32 = arith.constant 0 : i32
    %c0_i32_0 = arith.constant 0 : i32
    %c0_i32_1 = arith.constant 0 : i32
    return %c0_i32, %c0_i32_0 : i32, i32
  }
  func.func @transform_4(%arg0: i32) -> (i32, i32) {
    %c0_i32 = arith.constant 0 : i32
    %c0_i32_0 = arith.constant 0 : i32
    %c0_i32_1 = arith.constant 0 : i32
    return %c0_i32, %c0_i32_0 : i32, i32
  }
  func.func @transform_5(%arg0: i32) -> (i32, i32) {
    %c0_i32 = arith.constant 0 : i32
    %c0_i32_0 = arith.constant 0 : i32
    %c0_i32_1 = arith.constant 0 : i32
    return %c0_i32, %c0_i32_0 : i32, i32
  }
  func.func @transform_6(%arg0: i32) -> (i32, i32) {
    %c0_i32 = arith.constant 0 : i32
    %c0_i32_0 = arith.constant 0 : i32
    %c0_i32_1 = arith.constant 0 : i32
    return %c0_i32, %c0_i32_0 : i32, i32
  }
  func.func @transform_7(%arg0: i32) -> (i32, i32) {
    %c0_i32 = arith.constant 0 : i32
    %c0_i32_0 = arith.constant 0 : i32
    return %arg0, %c0_i32 : i32, i32
  }
  func.func @transform_8(%arg0: i32) -> (i32, i32) {
    %c0_i32 = arith.constant 0 : i32
    %c0_i32_0 = arith.constant 0 : i32
    return %arg0, %c0_i32 : i32, i32
  }
}

</mosaic_0001>

<llo_original>
// kernel: tpu_custom_call.1
$region0: #{tpu_custom_call.1}
  #allocation0 [shape = 'u32[]', space=smem, size = 0x4, offset = 0x4, fixed_abs, tag = 'smem constant byte address 0x4 - core index']
  #allocation1 [shape = 'u32[72,128]{1,0:T(1,128)}', space=vmem, size = 0x9000, scoped, tag = 'internal scratch']
  %s0 = inlined_call_operand.hbm [shape: bf16[128,128], index: 0, kind: input, shape index: {}]
  %s1 = inlined_call_operand.hbm [shape: bf16[128,128], index: 1, kind: input, shape index: {}]
  %s2 = inlined_call_operand.vmem [shape: f32[1,128], index: 2, kind: input, shape index: {}]
  %s3 = inlined_call_operand.hbm [shape: bf16[128,128], index: 3, kind: input, shape index: {}]
  %s4 = inlined_call_operand.vmem [shape: f32[1,128], index: 4, kind: input, shape index: {}]
  %s5 = inlined_call_operand.hbm [shape: bf16[128,128], index: 5, kind: input, shape index: {}]
  %s6 = inlined_call_operand.vmem [shape: f32[1,128], index: 6, kind: input, shape index: {}]
  %s7 = inlined_call_operand.hbm [shape: f32[128,128], index: 7, kind: output, shape index: {0}]
  %s8 = inlined_call_operand.hbm [shape: f32[128,128], index: 8, kind: output, shape index: {1}]
  %9 = xla_tuple %s7, %s8
  %s10 = sld [smem:[#allocation0]]
  $region62: #{tpu_custom_call.1} parent=0
    _
  %s12 = ssub.s32 1, %s10
  %s13 = scalar_select 0, %s12, %s10
  $region1: #{tpu_custom_call.1} parent=0
    #allocation2 [shape = 'u8[32768]{0}', space=vmem, size = 0x8000, scoped, tag = 'input window, operand 0, single buffered']
    #allocation3 [shape = 's32[1]{0}', space=sflag, size = 0x4, scoped, tag = 'scoped memory for tpu_custom_call.1']
    #allocation4 [shape = 's32[1]{0}', space=sflag, size = 0x4, scoped, tag = 'scoped memory for tpu_custom_call.1']
    #allocation5 [shape = 'u8[32768]{0}', space=vmem, size = 0x8000, scoped, tag = 'input window, operand 1, single buffered']
    #allocation6 [shape = 's32[1]{0}', space=sflag, size = 0x4, scoped, tag = 'scoped memory for tpu_custom_call.1']
    #allocation7 [shape = 'u8[32768]{0}', space=vmem, size = 0x8000, scoped, tag = 'input window, operand 3, single buffered']
    #allocation8 [shape = 'u8[32768]{0}', space=vmem, size = 0x8000, scoped, tag = 'input window, operand 5, single buffered']
    #allocation9 [shape = 's32[1]{0}', space=sflag, size = 0x4, scoped, tag = 'scoped memory for tpu_custom_call.1']
    #allocation10 [shape = 'u8[65536]{0}', space=vmem, size = 0x10000, scoped, tag = 'output window, operand 0, single buffered']
    #allocation11 [shape = 'u8[65536]{0}', space=vmem, size = 0x10000, scoped, tag = 'output window, operand 1, single buffered']
    #allocation12 [shape = 's32[1]{0}', space=sflag, size = 0x4, scoped, tag = 'scoped memory for tpu_custom_call.1']
    %14 = vsyncpa [#allocation3], 0
    %15 = vsyncpa [#allocation6], 0
    %16 = vsyncpa [#allocation9], 0
    %17 = vsyncpa [#allocation4], 0
    %18 = vsyncpa [#allocation12], 0
    // Predicated region
    $region2: #{tpu_custom_call.1} parent=1 // pred_check
      _
    $region3: #{tpu_custom_call.1} parent=1 // pred_check_branch
      %20 = sbr.rel (0) target = $region5
    $region4: #{tpu_custom_call.1} parent=1 // pred_region
      %22 = vsyncadd [#allocation3], 0
      %s23 = sshll.u32 %s0, 4
      %s24 = int_to_ptr.hbm [resolvable:$true] %s23
      %s25 = sshll.u32 [#allocation2], 4
      %s26 = int_to_ptr.vmem [resolvable:$true] %s25
      %31 = dma.hbm_to_vmem [thread:$0]  %s24, 1024, %s26, [#allocation3], 64, 64, 4
    $region5: #{tpu_custom_call.1} parent=1 // pred_fallthru
      _
    // Predicated region
    $region6: #{tpu_custom_call.1} parent=1 // pred_check
      _
    $region7: #{tpu_custom_call.1} parent=1 // pred_check_branch
      %33 = sbr.rel (0) target = $region9
    $region8: #{tpu_custom_call.1} parent=1 // pred_region
      %35 = vsyncadd [#allocation6], 0
      %s36 = sshll.u32 %s1, 4
      %s37 = int_to_ptr.hbm [resolvable:$true] %s36
      %s38 = sshll.u32 [#allocation5], 4
      %s39 = int_to_ptr.vmem [resolvable:$true] %s38
      %44 = dma.hbm_to_vmem [thread:$0]  %s37, 1024, %s39, [#allocation6], 64, 64, 4
    $region9: #{tpu_custom_call.1} parent=1 // pred_fallthru
      _
    // Predicated region
    $region10: #{tpu_custom_call.1} parent=1 // pred_check
      _
    $region11: #{tpu_custom_call.1} parent=1 // pred_check_branch
      %46 = sbr.rel (0) target = $region13
    $region12: #{tpu_custom_call.1} parent=1 // pred_region
      _
    $region13: #{tpu_custom_call.1} parent=1 // pred_fallthru
      _
    // Predicated region
    $region14: #{tpu_custom_call.1} parent=1 // pred_check
      _
    $region15: #{tpu_custom_call.1} parent=1 // pred_check_branch
      %48 = sbr.rel (0) target = $region17
    $region16: #{tpu_custom_call.1} parent=1 // pred_region
      %50 = vsyncadd [#allocation6], 0
      %s51 = sshll.u32 %s3, 4
      %s52 = int_to_ptr.hbm [resolvable:$true] %s51
      %s53 = sshll.u32 [#allocation7], 4
      %s54 = int_to_ptr.vmem [resolvable:$true] %s53
      %59 = dma.hbm_to_vmem [thread:$0]  %s52, 1024, %s54, [#allocation6], 64, 64, 4
    $region17: #{tpu_custom_call.1} parent=1 // pred_fallthru
      _
    // Predicated region
    $region18: #{tpu_custom_call.1} parent=1 // pred_check
      _
    $region19: #{tpu_custom_call.1} parent=1 // pred_check_branch
      %61 = sbr.rel (0) target = $region21
    $region20: #{tpu_custom_call.1} parent=1 // pred_region
      _
    $region21: #{tpu_custom_call.1} parent=1 // pred_fallthru
      _
    // Predicated region
    $region22: #{tpu_custom_call.1} parent=1 // pred_check
      _
    $region23: #{tpu_custom_call.1} parent=1 // pred_check_branch
      %63 = sbr.rel (0) target = $region25
    $region24: #{tpu_custom_call.1} parent=1 // pred_region
      %65 = vsyncadd [#allocation9], 0
      %s66 = sshll.u32 %s5, 4
      %s67 = int_to_ptr.hbm [resolvable:$true] %s66
      %s68 = sshll.u32 [#allocation8], 4
      %s69 = int_to_ptr.vmem [resolvable:$true] %s68
      %74 = dma.hbm_to_vmem [thread:$0]  %s67, 1024, %s69, [#allocation9], 64, 64, 4
    $region25: #{tpu_custom_call.1} parent=1 // pred_fallthru
      _
    // Predicated region
    $region26: #{tpu_custom_call.1} parent=1 // pred_check
      _
    $region27: #{tpu_custom_call.1} parent=1 // pred_check_branch
      %76 = sbr.rel (0) target = $region29
    $region28: #{tpu_custom_call.1} parent=1 // pred_region
      _
    $region29: #{tpu_custom_call.1} parent=1 // pred_fallthru
      _
    // Predicated region
    $region30: #{tpu_custom_call.1} parent=1 // pred_check
      _
    $region31: #{tpu_custom_call.1} parent=1 // pred_check_branch
      %78 = sbr.rel (0) target = $region33
    $region32: #{tpu_custom_call.1} parent=1 // pred_region
      %80 = dma.done [#allocation3], 1024
    $region33: #{tpu_custom_call.1} parent=1 // pred_fallthru
      _
    // Predicated region
    $region34: #{tpu_custom_call.1} parent=1 // pred_check
      _
    $region35: #{tpu_custom_call.1} parent=1 // pred_check_branch
      %82 = sbr.rel (0) target = $region37
    $region36: #{tpu_custom_call.1} parent=1 // pred_region
      %84 = dma.done [#allocation6], 1024
    $region37: #{tpu_custom_call.1} parent=1 // pred_fallthru
      _
    // Predicated region
    $region38: #{tpu_custom_call.1} parent=1 // pred_check
      _
    $region39: #{tpu_custom_call.1} parent=1 // pred_check_branch
      %86 = sbr.rel (0) target = $region41
    $region40: #{tpu_custom_call.1} parent=1 // pred_region
      %88 = dma.done [#allocation6], 1024
    $region41: #{tpu_custom_call.1} parent=1 // pred_fallthru
      _
    // Predicated region
    $region42: #{tpu_custom_call.1} parent=1 // pred_check
      _
    $region43: #{tpu_custom_call.1} parent=1 // pred_check_branch
      %90 = sbr.rel (0) target = $region45
    $region44: #{tpu_custom_call.1} parent=1 // pred_region
      %92 = dma.done [#allocation9], 1024
    $region45: #{tpu_custom_call.1} parent=1 // pred_fallthru
      _
    %v93 = vld [vmem:[#allocation2] sm:$0xf]
    %v94 = vld [vmem:[#allocation2 + $0x4] sm:$0xf]
    %v95 = vld [vmem:[#allocation2 + $0x8] sm:$0xf]
    %v96 = vld [vmem:[#allocation2 + $0xc] sm:$0xf]
    %v97 = vld [vmem:[#allocation2 + $0x10] sm:$0xf]
    %v98 = vld [vmem:[#allocation2 + $0x14] sm:$0xf]
    %v99 = vld [vmem:[#allocation2 + $0x18] sm:$0xf]
    %v100 = vld [vmem:[#allocation2 + $0x1c] sm:$0xf]
    %v101 = vld [vmem:[#allocation2 + $0x20] sm:$0xf]
    %v102 = vld [vmem:[#allocation2 + $0x24] sm:$0xf]
    %v103 = vld [vmem:[#allocation2 + $0x28] sm:$0xf]
    %v104 = vld [vmem:[#allocation2 + $0x2c] sm:$0xf]
    %v105 = vld [vmem:[#allocation2 + $0x30] sm:$0xf]
    %v106 = vld [vmem:[#allocation2 + $0x34] sm:$0xf]
    %v107 = vld [vmem:[#allocation2 + $0x38] sm:$0xf]
    %v108 = vld [vmem:[#allocation2 + $0x3c] sm:$0xf]
    %v109 = vld [vmem:[#allocation5] sm:$0xf]
    %v110 = vld [vmem:[#allocation5 + $0x4] sm:$0xf]
    %v111 = vld [vmem:[#allocation5 + $0x8] sm:$0xf]
    %v112 = vld [vmem:[#allocation5 + $0xc] sm:$0xf]
    %v113 = vld [vmem:[#allocation5 + $0x10] sm:$0xf]
    %v114 = vld [vmem:[#allocation5 + $0x14] sm:$0xf]
    %v115 = vld [vmem:[#allocation5 + $0x18] sm:$0xf]
    %v116 = vld [vmem:[#allocation5 + $0x1c] sm:$0xf]
    %v117 = vld [vmem:[#allocation5 + $0x20] sm:$0xf]
    %v118 = vld [vmem:[#allocation5 + $0x24] sm:$0xf]
    %v119 = vld [vmem:[#allocation5 + $0x28] sm:$0xf]
    %v120 = vld [vmem:[#allocation5 + $0x2c] sm:$0xf]
    %v121 = vld [vmem:[#allocation5 + $0x30] sm:$0xf]
    %v122 = vld [vmem:[#allocation5 + $0x34] sm:$0xf]
    %v123 = vld [vmem:[#allocation5 + $0x38] sm:$0xf]
    %v124 = vld [vmem:[#allocation5 + $0x3c] sm:$0xf]
    %v125 = vld [vmem:[%s2] sm:$0x1]
    %v127 = vperm.slane %v125, 0
    %v145 = vunpack.c.l.b16 %v93
    %v146 = vunpack.c.l.b16 %v94
    %v147 = vunpack.c.l.b16 %v95
    %v148 = vunpack.c.l.b16 %v96
    %v149 = vunpack.c.l.b16 %v97
    %v150 = vunpack.c.l.b16 %v98
    %v151 = vunpack.c.l.b16 %v99
    %v152 = vunpack.c.l.b16 %v100
    %v153 = vunpack.c.l.b16 %v101
    %v154 = vunpack.c.l.b16 %v102
    %v155 = vunpack.c.l.b16 %v103
    %v156 = vunpack.c.l.b16 %v104
    %v157 = vunpack.c.l.b16 %v105
    %v158 = vunpack.c.l.b16 %v106
    %v159 = vunpack.c.l.b16 %v107
    %v160 = vunpack.c.l.b16 %v108
    %v161 = vpack.c.b16 %v146, %v145
    %v162 = vpack.c.b16 %v148, %v147
    %v163 = vpack.c.b16 %v150, %v149
    %v164 = vpack.c.b16 %v152, %v151
    %v165 = vpack.c.b16 %v154, %v153
    %v166 = vpack.c.b16 %v156, %v155
    %v167 = vpack.c.b16 %v158, %v157
    %v168 = vpack.c.b16 %v160, %v159
    %v193 = vunpack.c.l.b16 %v109
    %v194 = vunpack.c.l.b16 %v110
    %v195 = vunpack.c.l.b16 %v111
    %v196 = vunpack.c.l.b16 %v112
    %v197 = vunpack.c.l.b16 %v113
    %v198 = vunpack.c.l.b16 %v114
    %v199 = vunpack.c.l.b16 %v115
    %v200 = vunpack.c.l.b16 %v116
    %v201 = vunpack.c.l.b16 %v117
    %v202 = vunpack.c.l.b16 %v118
    %v203 = vunpack.c.l.b16 %v119
    %v204 = vunpack.c.l.b16 %v120
    %v205 = vunpack.c.l.b16 %v121
    %v206 = vunpack.c.l.b16 %v122
    %v207 = vunpack.c.l.b16 %v123
    %v208 = vunpack.c.l.b16 %v124
    %v209 = vpack.c.b16 %v194, %v193
    %v210 = vpack.c.b16 %v196, %v195
    %v211 = vpack.c.b16 %v198, %v197
    %v212 = vpack.c.b16 %v200, %v199
    %v213 = vpack.c.b16 %v202, %v201
    %v214 = vpack.c.b16 %v204, %v203
    %v215 = vpack.c.b16 %v206, %v205
    %v216 = vpack.c.b16 %v208, %v207
    %225 = vmatpush.bf16.msra.mxu0 %v216
    %226 = vmatpush.bf16.msra.mxu0 %v215
    %227 = vmatpush.bf16.msra.mxu0 %v214
    %228 = vmatpush.bf16.msra.mxu0 %v213
    %229 = vmatpush.bf16.msra.mxu0 %v212
    %230 = vmatpush.bf16.msra.mxu0 %v211
    %231 = vmatpush.bf16.msra.mxu0 %v210
    %232 = vmatpush.bf16.msra.mxu0 %v209
    %233 = vmatmul.bf16.gmra.mxu0 %v161
    %v234 = vpop.f32.mrf.mxu0
    %v235 = vadd.f32 %v127, %v234
    %v236 = vpop.f32.mrf.mxu0
    %v237 = vadd.f32 %v127, %v236
    %238 = vmatmul.bf16.gmra.mxu0 %v162
    %v239 = vpop.f32.mrf.mxu0
    %v240 = vadd.f32 %v127, %v239
    %v241 = vpop.f32.mrf.mxu0
    %v242 = vadd.f32 %v127, %v241
    %243 = vmatmul.bf16.gmra.mxu0 %v163
    %v244 = vpop.f32.mrf.mxu0
    %v245 = vadd.f32 %v127, %v244
    %v246 = vpop.f32.mrf.mxu0
    %v247 = vadd.f32 %v127, %v246
    %248 = vmatmul.bf16.gmra.mxu0 %v164
    %v249 = vpop.f32.mrf.mxu0
    %v250 = vadd.f32 %v127, %v249
    %v251 = vpop.f32.mrf.mxu0
    %v252 = vadd.f32 %v127, %v251
    %253 = vmatmul.bf16.gmra.mxu0 %v165
    %v254 = vpop.f32.mrf.mxu0
    %v255 = vadd.f32 %v127, %v254
    %v256 = vpop.f32.mrf.mxu0
    %v257 = vadd.f32 %v127, %v256
    %258 = vmatmul.bf16.gmra.mxu0 %v166
    %v259 = vpop.f32.mrf.mxu0
    %v260 = vadd.f32 %v127, %v259
    %v261 = vpop.f32.mrf.mxu0
    %v262 = vadd.f32 %v127, %v261
    %263 = vmatmul.bf16.gmra.mxu0 %v167
    %v264 = vpop.f32.mrf.mxu0
    %v265 = vadd.f32 %v127, %v264
    %v266 = vpop.f32.mrf.mxu0
    %v267 = vadd.f32 %v127, %v266
    %268 = vmatmul.bf16.gmra.mxu0 %v168
    %v269 = vpop.f32.mrf.mxu0
    %v270 = vadd.f32 %v127, %v269
    %v271 = vpop.f32.mrf.mxu0
    %v272 = vadd.f32 %v127, %v271
    %273 = vdwg.mxu0
    %v274 = vmax.f32 %v235, 0.0
    %v275 = vmax.f32 %v237, 0.0
    %v276 = vmax.f32 %v240, 0.0
    %v277 = vmax.f32 %v242, 0.0
    %v278 = vmax.f32 %v245, 0.0
    %v279 = vmax.f32 %v247, 0.0
    %v280 = vmax.f32 %v250, 0.0
    %v281 = vmax.f32 %v252, 0.0
    %v282 = vmax.f32 %v255, 0.0
    %v283 = vmax.f32 %v257, 0.0
    %v284 = vmax.f32 %v260, 0.0
    %v285 = vmax.f32 %v262, 0.0
    %v286 = vmax.f32 %v265, 0.0
    %v287 = vmax.f32 %v267, 0.0
    %v288 = vmax.f32 %v270, 0.0
    %v289 = vmax.f32 %v272, 0.0
    %v290 = vpack.c.bf16 %v275, %v274
    %v291 = vpack.c.bf16 %v277, %v276
    %v292 = vpack.c.bf16 %v279, %v278
    %v293 = vpack.c.bf16 %v281, %v280
    %v294 = vpack.c.bf16 %v283, %v282
    %v295 = vpack.c.bf16 %v285, %v284
    %v296 = vpack.c.bf16 %v287, %v286
    %v297 = vpack.c.bf16 %v289, %v288
    %v298 = vld [vmem:[#allocation7] sm:$0xf]
    %v299 = vld [vmem:[#allocation7 + $0x4] sm:$0xf]
    %v300 = vld [vmem:[#allocation7 + $0x8] sm:$0xf]
    %v301 = vld [vmem:[#allocation7 + $0xc] sm:$0xf]
    %v302 = vld [vmem:[#allocation7 + $0x10] sm:$0xf]
    %v303 = vld [vmem:[#allocation7 + $0x14] sm:$0xf]
    %v304 = vld [vmem:[#allocation7 + $0x18] sm:$0xf]
    %v305 = vld [vmem:[#allocation7 + $0x1c] sm:$0xf]
    %v306 = vld [vmem:[#allocation7 + $0x20] sm:$0xf]
    %v307 = vld [vmem:[#allocation7 + $0x24] sm:$0xf]
    %v308 = vld [vmem:[#allocation7 + $0x28] sm:$0xf]
    %v309 = vld [vmem:[#allocation7 + $0x2c] sm:$0xf]
    %v310 = vld [vmem:[#allocation7 + $0x30] sm:$0xf]
    %v311 = vld [vmem:[#allocation7 + $0x34] sm:$0xf]
    %v312 = vld [vmem:[#allocation7 + $0x38] sm:$0xf]
    %v313 = vld [vmem:[#allocation7 + $0x3c] sm:$0xf]
    %v314 = vld [vmem:[%s4] sm:$0x1]
    %v316 = vperm.slane %v314, 0
    %v334 = vunpack.c.l.b16 %v298
    %v335 = vunpack.c.l.b16 %v299
    %v336 = vunpack.c.l.b16 %v300
    %v337 = vunpack.c.l.b16 %v301
    %v338 = vunpack.c.l.b16 %v302
    %v339 = vunpack.c.l.b16 %v303
    %v340 = vunpack.c.l.b16 %v304
    %v341 = vunpack.c.l.b16 %v305
    %v342 = vunpack.c.l.b16 %v306
    %v343 = vunpack.c.l.b16 %v307
    %v344 = vunpack.c.l.b16 %v308
    %v345 = vunpack.c.l.b16 %v309
    %v346 = vunpack.c.l.b16 %v310
    %v347 = vunpack.c.l.b16 %v311
    %v348 = vunpack.c.l.b16 %v312
    %v349 = vunpack.c.l.b16 %v313
    %v350 = vpack.c.b16 %v335, %v334
    %v351 = vpack.c.b16 %v337, %v336
    %v352 = vpack.c.b16 %v339, %v338
    %v353 = vpack.c.b16 %v341, %v340
    %v354 = vpack.c.b16 %v343, %v342
    %v355 = vpack.c.b16 %v345, %v344
    %v356 = vpack.c.b16 %v347, %v346
    %v357 = vpack.c.b16 %v349, %v348
    %366 = vmatpush.bf16.msra.mxu0 %v357
    %367 = vmatpush.bf16.msra.mxu0 %v356
    %368 = vmatpush.bf16.msra.mxu0 %v355
    %369 = vmatpush.bf16.msra.mxu0 %v354
    %370 = vmatpush.bf16.msra.mxu0 %v353
    %371 = vmatpush.bf16.msra.mxu0 %v352
    %372 = vmatpush.bf16.msra.mxu0 %v351
    %373 = vmatpush.bf16.msra.mxu0 %v350
    %374 = vmatmul.bf16.gmra.mxu0 %v290
    %v375 = vpop.f32.mrf.mxu0
    %v376 = vadd.f32 %v316, %v375
    %v377 = vpop.f32.mrf.mxu0
    %v378 = vadd.f32 %v316, %v377
    %379 = vmatmul.bf16.gmra.mxu0 %v291
    %v380 = vpop.f32.mrf.mxu0
    %v381 = vadd.f32 %v316, %v380
    %v382 = vpop.f32.mrf.mxu0
    %v383 = vadd.f32 %v316, %v382
    %384 = vmatmul.bf16.gmra.mxu0 %v292
    %v385 = vpop.f32.mrf.mxu0
    %v386 = vadd.f32 %v316, %v385
    %v387 = vpop.f32.mrf.mxu0
    %v388 = vadd.f32 %v316, %v387
    %389 = vmatmul.bf16.gmra.mxu0 %v293
    %v390 = vpop.f32.mrf.mxu0
    %v391 = vadd.f32 %v316, %v390
    %v392 = vpop.f32.mrf.mxu0
    %v393 = vadd.f32 %v316, %v392
    %394 = vmatmul.bf16.gmra.mxu0 %v294
    %v395 = vpop.f32.mrf.mxu0
    %v396 = vadd.f32 %v316, %v395
    %v397 = vpop.f32.mrf.mxu0
    %v398 = vadd.f32 %v316, %v397
    %399 = vmatmul.bf16.gmra.mxu0 %v295
    %v400 = vpop.f32.mrf.mxu0
    %v401 = vadd.f32 %v316, %v400
    %v402 = vpop.f32.mrf.mxu0
    %v403 = vadd.f32 %v316, %v402
    %404 = vmatmul.bf16.gmra.mxu0 %v296
    %v405 = vpop.f32.mrf.mxu0
    %v406 = vadd.f32 %v316, %v405
    %v407 = vpop.f32.mrf.mxu0
    %v408 = vadd.f32 %v316, %v407
    %409 = vmatmul.bf16.gmra.mxu0 %v297
    %v410 = vpop.f32.mrf.mxu0
    %v411 = vadd.f32 %v316, %v410
    %v412 = vpop.f32.mrf.mxu0
    %v413 = vadd.f32 %v316, %v412
    %414 = vdwg.mxu0
    %v415 = vmax.f32 %v376, 0.0
    %v416 = vmax.f32 %v378, 0.0
    %v417 = vmax.f32 %v381, 0.0
    %v418 = vmax.f32 %v383, 0.0
    %v419 = vmax.f32 %v386, 0.0
    %v420 = vmax.f32 %v388, 0.0
    %v421 = vmax.f32 %v391, 0.0
    %v422 = vmax.f32 %v393, 0.0
    %v423 = vmax.f32 %v396, 0.0
    %v424 = vmax.f32 %v398, 0.0
    %v425 = vmax.f32 %v401, 0.0
    %v426 = vmax.f32 %v403, 0.0
    %v427 = vmax.f32 %v406, 0.0
    %v428 = vmax.f32 %v408, 0.0
    %v429 = vmax.f32 %v411, 0.0
    %v430 = vmax.f32 %v413, 0.0
    %431 = vst [vmem:[#allocation10] sm:$0xff] %v415
    %432 = vst [vmem:[#allocation10 + $0x8] sm:$0xff] %v416
    %433 = vst [vmem:[#allocation10 + $0x10] sm:$0xff] %v417
    %434 = vst [vmem:[#allocation10 + $0x18] sm:$0xff] %v418
    %435 = vst [vmem:[#allocation10 + $0x20] sm:$0xff] %v419
    %436 = vst [vmem:[#allocation10 + $0x28] sm:$0xff] %v420
    %437 = vst [vmem:[#allocation10 + $0x30] sm:$0xff] %v421
    %438 = vst [vmem:[#allocation10 + $0x38] sm:$0xff] %v422
    %439 = vst [vmem:[#allocation10 + $0x40] sm:$0xff] %v423
    %440 = vst [vmem:[#allocation10 + $0x48] sm:$0xff] %v424
    %441 = vst [vmem:[#allocation10 + $0x50] sm:$0xff] %v425
    %442 = vst [vmem:[#allocation10 + $0x58] sm:$0xff] %v426
    %443 = vst [vmem:[#allocation10 + $0x60] sm:$0xff] %v427
    %444 = vst [vmem:[#allocation10 + $0x68] sm:$0xff] %v428
    %445 = vst [vmem:[#allocation10 + $0x70] sm:$0xff] %v429
    %446 = vst [vmem:[#allocation10 + $0x78] sm:$0xff] %v430
    %v447 = vpack.c.bf16 %v416, %v415
    %v448 = vpack.c.bf16 %v418, %v417
    %v449 = vpack.c.bf16 %v420, %v419
    %v450 = vpack.c.bf16 %v422, %v421
    %v451 = vpack.c.bf16 %v424, %v423
    %v452 = vpack.c.bf16 %v426, %v425
    %v453 = vpack.c.bf16 %v428, %v427
    %v454 = vpack.c.bf16 %v430, %v429
    %v455 = vld [vmem:[#allocation8] sm:$0xf]
    %v456 = vld [vmem:[#allocation8 + $0x4] sm:$0xf]
    %v457 = vld [vmem:[#allocation8 + $0x8] sm:$0xf]
    %v458 = vld [vmem:[#allocation8 + $0xc] sm:$0xf]
    %v459 = vld [vmem:[#allocation8 + $0x10] sm:$0xf]
    %v460 = vld [vmem:[#allocation8 + $0x14] sm:$0xf]
    %v461 = vld [vmem:[#allocation8 + $0x18] sm:$0xf]
    %v462 = vld [vmem:[#allocation8 + $0x1c] sm:$0xf]
    %v463 = vld [vmem:[#allocation8 + $0x20] sm:$0xf]
    %v464 = vld [vmem:[#allocation8 + $0x24] sm:$0xf]
    %v465 = vld [vmem:[#allocation8 + $0x28] sm:$0xf]
    %v466 = vld [vmem:[#allocation8 + $0x2c] sm:$0xf]
    %v467 = vld [vmem:[#allocation8 + $0x30] sm:$0xf]
    %v468 = vld [vmem:[#allocation8 + $0x34] sm:$0xf]
    %v469 = vld [vmem:[#allocation8 + $0x38] sm:$0xf]
    %v470 = vld [vmem:[#allocation8 + $0x3c] sm:$0xf]
    %v471 = vld [vmem:[%s6] sm:$0x1]
    %v473 = vperm.slane %v471, 0
    %v491 = vunpack.c.l.b16 %v455
    %v492 = vunpack.c.l.b16 %v456
    %v493 = vunpack.c.l.b16 %v457
    %v494 = vunpack.c.l.b16 %v458
    %v495 = vunpack.c.l.b16 %v459
    %v496 = vunpack.c.l.b16 %v460
    %v497 = vunpack.c.l.b16 %v461
    %v498 = vunpack.c.l.b16 %v462
    %v499 = vunpack.c.l.b16 %v463
    %v500 = vunpack.c.l.b16 %v464
    %v501 = vunpack.c.l.b16 %v465
    %v502 = vunpack.c.l.b16 %v466
    %v503 = vunpack.c.l.b16 %v467
    %v504 = vunpack.c.l.b16 %v468
    %v505 = vunpack.c.l.b16 %v469
    %v506 = vunpack.c.l.b16 %v470
    %v507 = vpack.c.b16 %v492, %v491
    %v508 = vpack.c.b16 %v494, %v493
    %v509 = vpack.c.b16 %v496, %v495
    %v510 = vpack.c.b16 %v498, %v497
    %v511 = vpack.c.b16 %v500, %v499
    %v512 = vpack.c.b16 %v502, %v501
    %v513 = vpack.c.b16 %v504, %v503
    %v514 = vpack.c.b16 %v506, %v505
    %523 = vmatpush.bf16.msra.mxu0 %v514
    %524 = vmatpush.bf16.msra.mxu0 %v513
    %525 = vmatpush.bf16.msra.mxu0 %v512
    %526 = vmatpush.bf16.msra.mxu0 %v511
    %527 = vmatpush.bf16.msra.mxu0 %v510
    %528 = vmatpush.bf16.msra.mxu0 %v509
    %529 = vmatpush.bf16.msra.mxu0 %v508
    %530 = vmatpush.bf16.msra.mxu0 %v507
    %531 = vmatmul.bf16.gmra.mxu0 %v447
    %v532 = vpop.f32.mrf.mxu0
    %v533 = vadd.f32 %v473, %v532
    %v534 = vpop.f32.mrf.mxu0
    %v535 = vadd.f32 %v473, %v534
    %536 = vmatmul.bf16.gmra.mxu0 %v448
    %v537 = vpop.f32.mrf.mxu0
    %v538 = vadd.f32 %v473, %v537
    %v539 = vpop.f32.mrf.mxu0
    %v540 = vadd.f32 %v473, %v539
    %541 = vmatmul.bf16.gmra.mxu0 %v449
    %v542 = vpop.f32.mrf.mxu0
    %v543 = vadd.f32 %v473, %v542
    %v544 = vpop.f32.mrf.mxu0
    %v545 = vadd.f32 %v473, %v544
    %546 = vmatmul.bf16.gmra.mxu0 %v450
    %v547 = vpop.f32.mrf.mxu0
    %v548 = vadd.f32 %v473, %v547
    %v549 = vpop.f32.mrf.mxu0
    %v550 = vadd.f32 %v473, %v549
    %551 = vmatmul.bf16.gmra.mxu0 %v451
    %v552 = vpop.f32.mrf.mxu0
    %v553 = vadd.f32 %v473, %v552
    %v554 = vpop.f32.mrf.mxu0
    %v555 = vadd.f32 %v473, %v554
    %556 = vmatmul.bf16.gmra.mxu0 %v452
    %v557 = vpop.f32.mrf.mxu0
    %v558 = vadd.f32 %v473, %v557
    %v559 = vpop.f32.mrf.mxu0
    %v560 = vadd.f32 %v473, %v559
    %561 = vmatmul.bf16.gmra.mxu0 %v453
    %v562 = vpop.f32.mrf.mxu0
    %v563 = vadd.f32 %v473, %v562
    %v564 = vpop.f32.mrf.mxu0
    %v565 = vadd.f32 %v473, %v564
    %566 = vmatmul.bf16.gmra.mxu0 %v454
    %v567 = vpop.f32.mrf.mxu0
    %v568 = vadd.f32 %v473, %v567
    %v569 = vpop.f32.mrf.mxu0
    %v570 = vadd.f32 %v473, %v569
    %571 = vdwg.mxu0
    %572 = vst [vmem:[#allocation11] sm:$0xff] %v533
    %573 = vst [vmem:[#allocation11 + $0x8] sm:$0xff] %v535
    %574 = vst [vmem:[#allocation11 + $0x10] sm:$0xff] %v538
    %575 = vst [vmem:[#allocation11 + $0x18] sm:$0xff] %v540
    %576 = vst [vmem:[#allocation11 + $0x20] sm:$0xff] %v543
    %577 = vst [vmem:[#allocation11 + $0x28] sm:$0xff] %v545
    %578 = vst [vmem:[#allocation11 + $0x30] sm:$0xff] %v548
    %579 = vst [vmem:[#allocation11 + $0x38] sm:$0xff] %v550
    %580 = vst [vmem:[#allocation11 + $0x40] sm:$0xff] %v553
    %581 = vst [vmem:[#allocation11 + $0x48] sm:$0xff] %v555
    %582 = vst [vmem:[#allocation11 + $0x50] sm:$0xff] %v558
    %583 = vst [vmem:[#allocation11 + $0x58] sm:$0xff] %v560
    %584 = vst [vmem:[#allocation11 + $0x60] sm:$0xff] %v563
    %585 = vst [vmem:[#allocation11 + $0x68] sm:$0xff] %v565
    %586 = vst [vmem:[#allocation11 + $0x70] sm:$0xff] %v568
    %587 = vst [vmem:[#allocation11 + $0x78] sm:$0xff] %v570
    // Predicated region
    $region46: #{tpu_custom_call.1} parent=1 // pred_check
      _
    $region47: #{tpu_custom_call.1} parent=1 // pred_check_branch
      %589 = sbr.rel (0) target = $region49
    $region48: #{tpu_custom_call.1} parent=1 // pred_region
      %591 = vsyncadd [#allocation4], 0
      %s592 = sshll.u32 [#allocation10], 4
      %s593 = int_to_ptr.vmem [resolvable:$true] %s592
      %s594 = sshll.u32 %s7, 4
      %s595 = int_to_ptr.hbm [resolvable:$true] %s594
      %600 = dma.vmem_to_hbm [thread:$0]  %s593, 2048, %s595, [#allocation4], 128, 128, 8
    $region49: #{tpu_custom_call.1} parent=1 // pred_fallthru
      _
    // Predicated region
    $region50: #{tpu_custom_call.1} parent=1 // pred_check
      _
    $region51: #{tpu_custom_call.1} parent=1 // pred_check_branch
      %602 = sbr.rel (0) target = $region53
    $region52: #{tpu_custom_call.1} parent=1 // pred_region
      %604 = vsyncadd [#allocation12], 0
      %s605 = sshll.u32 [#allocation11], 4
      %s606 = int_to_ptr.vmem [resolvable:$true] %s605
      %s607 = sshll.u32 %s8, 4
      %s608 = int_to_ptr.hbm [resolvable:$true] %s607
      %613 = dma.vmem_to_hbm [thread:$0]  %s606, 2048, %s608, [#allocation12], 128, 128, 8
    $region53: #{tpu_custom_call.1} parent=1 // pred_fallthru
      _
    // Predicated region
    $region54: #{tpu_custom_call.1} parent=1 // pred_check
      _
    $region55: #{tpu_custom_call.1} parent=1 // pred_check_branch
      %615 = sbr.rel (0) target = $region57
    $region56: #{tpu_custom_call.1} parent=1 // pred_region
      %617 = dma.done [#allocation4], 2048
    $region57: #{tpu_custom_call.1} parent=1 // pred_fallthru
      _
    // Predicated region
    $region58: #{tpu_custom_call.1} parent=1 // pred_check
      _
    $region59: #{tpu_custom_call.1} parent=1 // pred_check_branch
      %619 = sbr.rel (0) target = $region61
    $region60: #{tpu_custom_call.1} parent=1 // pred_region
      %621 = dma.done [#allocation12], 2048
    $region61: #{tpu_custom_call.1} parent=1 // pred_fallthru
      _
    %622 = vsyncpa [#allocation3], 1
    %623 = vsyncpa [#allocation6], 1
    %624 = vsyncpa [#allocation9], 1
    %625 = vsyncpa [#allocation4], 1
    %626 = vsyncpa [#allocation12], 1

</llo_original>
